<compile_context>
chip_gen: v7x
topology: tpu7x:2x2x1
jax: 0.10.0
libtpu: 0.0.40
codegen_flags: <defaults>
</compile_context>

<pallas_src>
import jax
import jax.numpy as jnp
from jax.experimental import pallas as pl
from jax.experimental.pallas import tpu as pltpu

F32 = jnp.float32
BF16 = jnp.bfloat16

# ------------------------- parameter-slab indices -------------------------
# One fused weight per layer (all branches / all token groups together).
IW_L1, IW_L2, IW_PROC, IW_DEC1, IW_FIN = range(5)
N_SLAB = 5


def _round_up(a, b):
    return (a + b - 1) // b * b


def _block_diag(w, k):
    """k copies of w along the diagonal: (k*din, k*dout)."""
    return jnp.kron(jnp.eye(k, dtype=w.dtype), w)


def _pack_params(params, K1, K2, Dp, Do, Ds, H, S):
    """Pack all layers into one (N_SLAB, S, S) bf16 weight slab and one
    (N_SLAB, 1, S) f32 bias slab (zero padded), with the ped/obs/self branches
    fused into a single lane-packed state and the token-axis sum folded into
    the decoder-L1 weights."""
    (w1p, b1p, w2p, b2p,
     w1o, b1o, w2o, b2o,
     w1s, b1s, w2s, b2s,
     wp, bp, wself, bself,
     wd1, bd1, wd2, bd2,
     wpr, bpr) = [jnp.asarray(a, F32) for a in params]

    # lane offsets of the ped / obs / self blocks
    in_off = (0, K1 * Dp, K1 * Dp + K2 * Do)   # in the concatenated input
    st_off = (0, K1 * H, (K1 + K2) * H)        # in the fused state

    W = [jnp.zeros((S, S), F32) for _ in range(N_SLAB)]
    B = [jnp.zeros((1, S), F32) for _ in range(N_SLAB)]

    def put_w(i, w, r, c):
        W[i] = W[i].at[r:r + w.shape[0], c:c + w.shape[1]].set(w)

    def put_b(i, b, c):
        B[i] = B[i].at[:, c:c + b.shape[1]].set(b)

    # fused encoder layer 1 : concatenated input lanes -> token-major state lanes
    put_w(IW_L1, _block_diag(w1p, K1), in_off[0], st_off[0])
    put_w(IW_L1, _block_diag(w1o, K2), in_off[1], st_off[1])
    put_w(IW_L1, w1s, in_off[2], st_off[2])
    put_b(IW_L1, jnp.tile(b1p, (1, K1)), st_off[0])
    put_b(IW_L1, jnp.tile(b1o, (1, K2)), st_off[1])
    put_b(IW_L1, b1s, st_off[2])

    # fused encoder layer 2 : state -> state (block-diagonal per token group)
    put_w(IW_L2, _block_diag(w2p, K1), st_off[0], st_off[0])
    put_w(IW_L2, _block_diag(w2o, K2), st_off[1], st_off[1])
    put_w(IW_L2, w2s, st_off[2], st_off[2])
    put_b(IW_L2, jnp.tile(b2p, (1, K1)), st_off[0])
    put_b(IW_L2, jnp.tile(b2o, (1, K2)), st_off[1])
    put_b(IW_L2, b2s, st_off[2])

    # fused ResBlock processors: ped AND obs token groups share the ped
    # processor (they are concatenated before ped_processor in the reference);
    # the self group uses the self processor.
    put_w(IW_PROC, _block_diag(wp, K1), st_off[0], st_off[0])
    put_w(IW_PROC, _block_diag(wp, K2), st_off[1], st_off[1])
    put_w(IW_PROC, wself, st_off[2], st_off[2])
    put_b(IW_PROC, jnp.tile(bp, (1, K1)), st_off[0])
    put_b(IW_PROC, jnp.tile(bp, (1, K2)), st_off[1])
    put_b(IW_PROC, bself, st_off[2])

    # decoder layer 1 with the token-axis sum folded into the weights:
    #   cat([sum_g proc_g, self_proc]) @ wd1  ==  state @ WD1
    for g in range(K1 + K2):
        put_w(IW_DEC1, wd1[:H, :], g * H, 0)
    put_w(IW_DEC1, wd1[H:, :], st_off[2], 0)
    put_b(IW_DEC1, bd1, 0)

    # decoder layer 2 fused with the predictor (no nonlinearity between them)
    put_w(IW_FIN, jnp.dot(wd2, wpr), 0, 0)
    put_b(IW_FIN, jnp.dot(bd2, wpr) + bpr, 0)

    w_slab = jnp.stack(W).astype(BF16)   # (N_SLAB, S, S)  bf16 MXU operands
    b_slab = jnp.stack(B)                # (N_SLAB, 1, S)  f32 biases
    return w_slab, b_slab


def _make_kernel(W_in, W_st, W_dc, n_out):
    def kernel(w_ref, b_ref, x_ref, out_ref):
        relu = lambda v: jnp.maximum(v, 0.0)

        def lin(x, i, nin, nout):
            # static, 128-aligned slab slices -> exact-size, lane-dense MXU operands
            return (jnp.dot(x, w_ref[i, :nin, :nout],
                            preferred_element_type=F32)
                    + b_ref[i, :, :nout])

        x = x_ref[...]                                            # (TN, W_in) bf16
        h = relu(lin(x, IW_L1, W_in, W_st))                       # enc L1 (all branches)
        h = lin(h.astype(BF16), IW_L2, W_st, W_st)                # enc L2 (Identity out)
        h = relu(lin(h.astype(BF16), IW_PROC, W_st, W_st)) + h    # ResBlock processors
        d = relu(lin(h.astype(BF16), IW_DEC1, W_st, W_dc))        # dec L1 (+ folded token sum)
        y = lin(d.astype(BF16), IW_FIN, W_dc, W_dc)               # dec L2 fused w/ predictor
        out_ref[...] = y[:, :n_out]
    return kernel


def make_base_sim_forward(params, K1, K2, *, tn=1024):
    """Pack the 22 BaseSimModel parameters ONCE into two VMEM slabs and return
    a jitted forward(ped, obs, slf) -> (N, 2)."""
    Dp = params[0].shape[0]      # w1p is (Dp, H)
    Do = params[4].shape[0]      # w1o is (Do, H)
    Ds = params[8].shape[0]      # w1s is (Ds, H)
    H = params[2].shape[0]       # w2p is (H, H)
    D_dec = params[16].shape[1]  # wd1 is (2H, D_dec)
    n_out = params[20].shape[1]  # wpr is (D_dec, n_out)

    raw_in = K1 * Dp + K2 * Do + Ds
    # all lane widths padded to the 128-lane granule (review item: lane-dense vregs)
    W_in = _round_up(raw_in, 128)
    W_st = _round_up((K1 + K2 + 1) * H, 128)
    W_dc = _round_up(D_dec, 128)
    S = max(W_in, W_st, W_dc, _round_up(n_out, 128))

    w_slab, b_slab = _pack_params(params, K1, K2, Dp, Do, Ds, H, S)
    kernel = _make_kernel(W_in, W_st, W_dc, n_out)

    def _forward(ped, obs, slf, w_slab, b_slab):
        N = ped.shape[0]
        # one concatenated bf16 feature matrix -> one feature DMA per grid step
        x = jnp.concatenate(
            [ped.reshape(N, K1 * Dp), obs.reshape(N, K2 * Do), slf.reshape(N, Ds)],
            axis=1).astype(BF16)

        n_pad = _round_up(N, 8)
        tn_eff = min(_round_up(tn, 8), n_pad)
        # v7x: keep >= 2 "parallel" batch tiles (dual TensorCore) once the batch
        # is big enough that the extra ~0.35us grid step is negligible.
        if tn_eff == n_pad and n_pad >= 128:
            tn_eff = _round_up((n_pad + 1) // 2, 8)
        Np = _round_up(N, tn_eff)
        x = jnp.pad(x, ((0, Np - N), (0, W_in - raw_in)))
        grid = (Np // tn_eff,)

        out = pl.pallas_call(
            kernel,
            out_shape=jax.ShapeDtypeStruct((Np, n_out), F32),
            grid_spec=pltpu.PrefetchScalarGridSpec(
                num_scalar_prefetch=0,
                grid=grid,
                in_specs=[
                    # parameter slabs: constant index_map -> DMA'd once, VMEM
                    # resident; single buffer (no point double-buffering them).
                    pl.BlockSpec((N_SLAB, S, S), lambda i: (0, 0, 0),
                                 pipeline_mode=pl.Buffered(1)),
                    pl.BlockSpec((N_SLAB, 1, S), lambda i: (0, 0, 0),
                                 pipeline_mode=pl.Buffered(1)),
                    # batch-tiled, double-buffered fused feature matrix
                    pl.BlockSpec((tn_eff, W_in), lambda i: (i, 0)),
                ],
                out_specs=pl.BlockSpec((tn_eff, n_out), lambda i: (i, 0)),
            ),
            compiler_params=pltpu.CompilerParams(
                dimension_semantics=("parallel",),
                # covers double-buffered inputs + live (TN, 256) f32/bf16
                # temporaries up to TN ~ 4096 on every generation.
                vmem_limit_bytes=32 * 1024 * 1024),
        )(w_slab, b_slab, x)
        return out[:N]

    fwd = jax.jit(_forward)
    return lambda ped, obs, slf: fwd(ped, obs, slf, w_slab, b_slab)


# ----------------------------- parameter init -----------------------------

def init_linear(key, fan_in, fan_out):
    k1, k2 = jax.random.split(key)
    bound = float(fan_in) ** -0.5
    w = jax.random.uniform(k1, (fan_in, fan_out), F32, -bound, bound)
    b = jax.random.uniform(k2, (1, fan_out), F32, -bound, bound)
    return w, b


def make_params(key, d_ped, d_obs, d_self, H, D_dec):
    keys = jax.random.split(key, 11)
    w1p, b1p = init_linear(keys[0], d_ped, H)
    w2p, b2p = init_linear(keys[1], H, H)
    w1o, b1o = init_linear(keys[2], d_obs, H)
    w2o, b2o = init_linear(keys[3], H, H)
    w1s, b1s = init_linear(keys[4], d_self, H)
    w2s, b2s = init_linear(keys[5], H, H)
    wp, bp = init_linear(keys[6], H, H)      # ped processor ResBlock
    ws, bs = init_linear(keys[7], H, H)      # self processor ResBlock
    wd1, bd1 = init_linear(keys[8], 2 * H, D_dec)
    wd2, bd2 = init_linear(keys[9], D_dec, D_dec)
    wpr, bpr = init_linear(keys[10], D_dec, 2)
    return (w1p, b1p, w2p, b2p,
            w1o, b1o, w2o, b2o,
            w1s, b1s, w2s, b2s,
            wp, bp, ws, bs,
            wd1, bd1, wd2, bd2,
            wpr, bpr)


# ---------------------------- pure-JAX reference ----------------------------

def ref_forward(ped, obs, slf, params):
    (w1p, b1p, w2p, b2p,
     w1o, b1o, w2o, b2o,
     w1s, b1s, w2s, b2s,
     wp, bp, ws, bs,
     wd1, bd1, wd2, bd2,
     wpr, bpr) = params

    def mlp2(x, w1, b1, w2, b2):
        return jax.nn.relu(x @ w1 + b1) @ w2 + b2

    pe = mlp2(ped, w1p, b1p, w2p, b2p)                      # (N, K1, H)
    oe = mlp2(obs, w1o, b1o, w2o, b2o)                      # (N, K2, H)
    pcat = jnp.concatenate([pe, oe], axis=1)                # (N, K1+K2, H)
    se = mlp2(slf, w1s, b1s, w2s, b2s)                      # (N, H)
    pproc = jax.nn.relu(pcat @ wp + bp) + pcat              # ResBlock per token
    sproc = jax.nn.relu(se @ ws + bs) + se
    psum = jnp.sum(pproc, axis=1)                           # (N, H)
    cat = jnp.concatenate([psum, sproc], axis=1)            # (N, 2H)
    d = jax.nn.relu(cat @ wd1 + bd1) @ wd2 + bd2            # decoder
    return d @ wpr + bpr                                    # (N, 2)


# ---------------------------------- main ----------------------------------

if __name__ == "__main__":
    # args: ped_feature_dim=8, obs_feature_dim=6, self_feature_dim=4,
    #       encoder/processor/decoder hidden size=32, 2/1/2 hidden layers,
    #       dropout=0 (eval), activation='relu'
    N, K1, K2 = 4, 3, 2
    D_PED, D_OBS, D_SELF = 8, 6, 4
    H, D_DEC = 32, 32
    TOL = 5e-2   # bf16 MXU operands vs. the f32 reference

    key = jax.random.PRNGKey(0)
    k_ped, k_obs, k_self, k_par = jax.random.split(key, 4)
    ped = jax.random.normal(k_ped, (N, K1, D_PED), F32)
    obs = jax.random.normal(k_obs, (N, K2, D_OBS), F32)
    slf = jax.random.normal(k_self, (N, D_SELF), F32)
    params = make_params(k_par, D_PED, D_OBS, D_SELF, H, D_DEC)

    forward = make_base_sim_forward(params, K1, K2, tn=1024)

    out = jax.block_until_ready(forward(ped, obs, slf))
    ref = ref_forward(ped, obs, slf, params)
    assert out.shape == (N, 2)
    assert jnp.allclose(out, ref, rtol=TOL, atol=TOL), (out, ref)

    # larger batch: exercises multi-tile grid, batch padding, and the
    # >= 2-tile split used for v7x dual-core parallelism
    N2 = 300
    k2p, k2o, k2s = jax.random.split(jax.random.PRNGKey(1), 3)
    ped2 = jax.random.normal(k2p, (N2, K1, D_PED), F32)
    obs2 = jax.random.normal(k2o, (N2, K2, D_OBS), F32)
    slf2 = jax.random.normal(k2s, (N2, D_SELF), F32)
    ref2 = ref_forward(ped2, obs2, slf2, params)

    out2 = jax.block_until_ready(forward(ped2, obs2, slf2))
    assert out2.shape == (N2, 2)
    assert jnp.allclose(out2, ref2, rtol=TOL, atol=TOL), (out2, ref2)

    # small explicit tile: many grid steps + padded tail rows
    forward_small = make_base_sim_forward(params, K1, K2, tn=64)
    out3 = jax.block_until_ready(forward_small(ped2, obs2, slf2))
    assert out3.shape == (N2, 2)
    assert jnp.allclose(out3, ref2, rtol=TOL, atol=TOL), (out3, ref2)

    print("KERNEL_OK")
</pallas_src>

<mosaic_0001>
module attributes {stable_mosaic.version = 11 : i64} {
  func.func @kernel(%arg0: i32, %arg1: memref<5x256x256xbf16, #tpu.memory_space<vmem>>, %arg2: memref<5x1x256xf32, #tpu.memory_space<vmem>>, %arg3: memref<8x128xbf16, #tpu.memory_space<vmem>>, %arg4: memref<8x2xf32, #tpu.memory_space<vmem>>) attributes {dimension_semantics = [#tpu.dimension_semantics<parallel>], iteration_bounds = array<i64: 1>, scalar_prefetch = 0 : i64, scratch_operands = 0 : i64, tpu.core_type = #tpu.core_type<tc>, window_params = [{pipeline_mode = #tpu.pipeline_mode<synchronous>, transform_indices = @transform_0, window_bounds = array<i64: 5, 256, 256>}, {pipeline_mode = #tpu.pipeline_mode<synchronous>, transform_indices = @transform_1, window_bounds = array<i64: 5, 1, 256>}, {transform_indices = @transform_2, window_bounds = array<i64: 8, 128>}, {transform_indices = @transform_3, window_bounds = array<i64: 8, 2>}]} {
    %c0 = arith.constant 0 : index
    %c0_0 = arith.constant 0 : index
    %0 = vector.load %arg3[%c0, %c0_0] : memref<8x128xbf16, #tpu.memory_space<vmem>>, vector<8x128xbf16>
    %c0_1 = arith.constant 0 : index
    %c0_2 = arith.constant 0 : index
    %c0_3 = arith.constant 0 : index
    %1 = vector.load %arg1[%c0_1, %c0_2, %c0_3] : memref<5x256x256xbf16, #tpu.memory_space<vmem>>, vector<1x128x256xbf16>
    %2 = vector.shape_cast %1 : vector<1x128x256xbf16> to vector<128x256xbf16>
    %cst = arith.constant dense<0.000000e+00> : vector<8x256xf32>
    %3 = tpu.matmul %0, %2, %cst {dimension_numbers = #tpu.dot_dimension_numbers<[1], [0], [0], [1], [0, 0, 1, 1], [], []>} : vector<8x128xbf16>, vector<128x256xbf16>, vector<8x256xf32> -> vector<8x256xf32>
    %c0_4 = arith.constant 0 : index
    %c0_5 = arith.constant 0 : index
    %c0_6 = arith.constant 0 : index
    %4 = vector.load %arg2[%c0_4, %c0_5, %c0_6] : memref<5x1x256xf32, #tpu.memory_space<vmem>>, vector<1x1x256xf32>
    %5 = vector.shape_cast %4 : vector<1x1x256xf32> to vector<1x256xf32>
    %6 = vector.broadcast %5 : vector<1x256xf32> to vector<8x256xf32>
    %7 = arith.addf %3, %6 : vector<8x256xf32>
    %cst_7 = arith.constant 0.000000e+00 : f32
    %8 = vector.broadcast %cst_7 : f32 to vector<8x256xf32>
    %9 = arith.maximumf %7, %8 : vector<8x256xf32>
    %10 = arith.truncf %9 : vector<8x256xf32> to vector<8x256xbf16>
    %c1 = arith.constant 1 : index
    %c0_8 = arith.constant 0 : index
    %c0_9 = arith.constant 0 : index
    %11 = vector.load %arg1[%c1, %c0_8, %c0_9] : memref<5x256x256xbf16, #tpu.memory_space<vmem>>, vector<1x256x256xbf16>
    %12 = vector.shape_cast %11 : vector<1x256x256xbf16> to vector<256x256xbf16>
    %cst_10 = arith.constant dense<0.000000e+00> : vector<8x256xf32>
    %13 = tpu.matmul %10, %12, %cst_10 {dimension_numbers = #tpu.dot_dimension_numbers<[1], [0], [0], [1], [0, 0, 1, 1], [], []>} : vector<8x256xbf16>, vector<256x256xbf16>, vector<8x256xf32> -> vector<8x256xf32>
    %c1_11 = arith.constant 1 : index
    %c0_12 = arith.constant 0 : index
    %c0_13 = arith.constant 0 : index
    %14 = vector.load %arg2[%c1_11, %c0_12, %c0_13] : memref<5x1x256xf32, #tpu.memory_space<vmem>>, vector<1x1x256xf32>
    %15 = vector.shape_cast %14 : vector<1x1x256xf32> to vector<1x256xf32>
    %16 = vector.broadcast %15 : vector<1x256xf32> to vector<8x256xf32>
    %17 = arith.addf %13, %16 : vector<8x256xf32>
    %18 = arith.truncf %17 : vector<8x256xf32> to vector<8x256xbf16>
    %c2 = arith.constant 2 : index
    %c0_14 = arith.constant 0 : index
    %c0_15 = arith.constant 0 : index
    %19 = vector.load %arg1[%c2, %c0_14, %c0_15] : memref<5x256x256xbf16, #tpu.memory_space<vmem>>, vector<1x256x256xbf16>
    %20 = vector.shape_cast %19 : vector<1x256x256xbf16> to vector<256x256xbf16>
    %cst_16 = arith.constant dense<0.000000e+00> : vector<8x256xf32>
    %21 = tpu.matmul %18, %20, %cst_16 {dimension_numbers = #tpu.dot_dimension_numbers<[1], [0], [0], [1], [0, 0, 1, 1], [], []>} : vector<8x256xbf16>, vector<256x256xbf16>, vector<8x256xf32> -> vector<8x256xf32>
    %c2_17 = arith.constant 2 : index
    %c0_18 = arith.constant 0 : index
    %c0_19 = arith.constant 0 : index
    %22 = vector.load %arg2[%c2_17, %c0_18, %c0_19] : memref<5x1x256xf32, #tpu.memory_space<vmem>>, vector<1x1x256xf32>
    %23 = vector.shape_cast %22 : vector<1x1x256xf32> to vector<1x256xf32>
    %24 = vector.broadcast %23 : vector<1x256xf32> to vector<8x256xf32>
    %25 = arith.addf %21, %24 : vector<8x256xf32>
    %cst_20 = arith.constant 0.000000e+00 : f32
    %26 = vector.broadcast %cst_20 : f32 to vector<8x256xf32>
    %27 = arith.maximumf %25, %26 : vector<8x256xf32>
    %28 = arith.addf %27, %17 : vector<8x256xf32>
    %29 = arith.truncf %28 : vector<8x256xf32> to vector<8x256xbf16>
    %c3 = arith.constant 3 : index
    %c0_21 = arith.constant 0 : index
    %c0_22 = arith.constant 0 : index
    %30 = vector.load %arg1[%c3, %c0_21, %c0_22] : memref<5x256x256xbf16, #tpu.memory_space<vmem>>, vector<1x256x128xbf16>
    %31 = vector.shape_cast %30 : vector<1x256x128xbf16> to vector<256x128xbf16>
    %cst_23 = arith.constant dense<0.000000e+00> : vector<8x128xf32>
    %32 = tpu.matmul %29, %31, %cst_23 {dimension_numbers = #tpu.dot_dimension_numbers<[1], [0], [0], [1], [0, 0, 1, 1], [], []>} : vector<8x256xbf16>, vector<256x128xbf16>, vector<8x128xf32> -> vector<8x128xf32>
    %c3_24 = arith.constant 3 : index
    %c0_25 = arith.constant 0 : index
    %c0_26 = arith.constant 0 : index
    %33 = vector.load %arg2[%c3_24, %c0_25, %c0_26] : memref<5x1x256xf32, #tpu.memory_space<vmem>>, vector<1x1x128xf32>
    %34 = vector.shape_cast %33 : vector<1x1x128xf32> to vector<1x128xf32>
    %35 = vector.broadcast %34 : vector<1x128xf32> to vector<8x128xf32>
    %36 = arith.addf %32, %35 : vector<8x128xf32>
    %cst_27 = arith.constant 0.000000e+00 : f32
    %37 = vector.broadcast %cst_27 : f32 to vector<8x128xf32>
    %38 = arith.maximumf %36, %37 : vector<8x128xf32>
    %39 = arith.truncf %38 : vector<8x128xf32> to vector<8x128xbf16>
    %c4 = arith.constant 4 : index
    %c0_28 = arith.constant 0 : index
    %c0_29 = arith.constant 0 : index
    %40 = vector.load %arg1[%c4, %c0_28, %c0_29] : memref<5x256x256xbf16, #tpu.memory_space<vmem>>, vector<1x128x128xbf16>
    %41 = vector.shape_cast %40 : vector<1x128x128xbf16> to vector<128x128xbf16>
    %cst_30 = arith.constant dense<0.000000e+00> : vector<8x128xf32>
    %42 = tpu.matmul %39, %41, %cst_30 {dimension_numbers = #tpu.dot_dimension_numbers<[1], [0], [0], [1], [0, 0, 1, 1], [], []>} : vector<8x128xbf16>, vector<128x128xbf16>, vector<8x128xf32> -> vector<8x128xf32>
    %c4_31 = arith.constant 4 : index
    %c0_32 = arith.constant 0 : index
    %c0_33 = arith.constant 0 : index
    %43 = vector.load %arg2[%c4_31, %c0_32, %c0_33] : memref<5x1x256xf32, #tpu.memory_space<vmem>>, vector<1x1x128xf32>
    %44 = vector.shape_cast %43 : vector<1x1x128xf32> to vector<1x128xf32>
    %45 = vector.broadcast %44 : vector<1x128xf32> to vector<8x128xf32>
    %46 = arith.addf %42, %45 : vector<8x128xf32>
    %47 = vector.extract_strided_slice %46 {offsets = [0, 0], sizes = [8, 2], strides = [1, 1]} : vector<8x128xf32> to vector<8x2xf32>
    %c0_34 = arith.constant 0 : index
    %c0_35 = arith.constant 0 : index
    %48 = vector.load %arg4[%c0_34, %c0_35] : memref<8x2xf32, #tpu.memory_space<vmem>>, vector<8x2xf32>
    tpu.vector_store %arg4[%c0_34, %c0_35], %47 {strides = array<i32>} : memref<8x2xf32, #tpu.memory_space<vmem>>, vector<8x2xf32>,
    return
  }
  func.func @transform_0(%arg0: i32) -> (i32, i32, i32) {
    %c0_i32 = arith.constant 0 : i32
    %c0_i32_0 = arith.constant 0 : i32
    %c0_i32_1 = arith.constant 0 : i32
    %c0_i32_2 = arith.constant 0 : i32
    return %c0_i32, %c0_i32_0, %c0_i32_1 : i32, i32, i32
  }
  func.func @transform_1(%arg0: i32) -> (i32, i32, i32) {
    %c0_i32 = arith.constant 0 : i32
    %c0_i32_0 = arith.constant 0 : i32
    %c0_i32_1 = arith.constant 0 : i32
    %c0_i32_2 = arith.constant 0 : i32
    return %c0_i32, %c0_i32_0, %c0_i32_1 : i32, i32, i32
  }
  func.func @transform_2(%arg0: i32) -> (i32, i32) {
    %c0_i32 = arith.constant 0 : i32
    %c0_i32_0 = arith.constant 0 : i32
    return %arg0, %c0_i32 : i32, i32
  }
  func.func @transform_3(%arg0: i32) -> (i32, i32) {
    %c0_i32 = arith.constant 0 : i32
    %c0_i32_0 = arith.constant 0 : i32
    return %arg0, %c0_i32 : i32, i32
  }
}

</mosaic_0001>

<llo_original>
// kernel: _forward.1
$region0: #{_forward.1}
  #allocation0 [shape = 'u32[]', space=smem, size = 0x4, offset = 0x4, fixed_abs, tag = 'smem constant byte address 0x4 - core index']
  #allocation1 [shape = 'u32[144,128]{1,0:T(1,128)}', space=vmem, size = 0x12000, scoped, tag = 'internal scratch']
  %s0 = inlined_call_operand.hbm [shape: bf16[5,256,256], index: 0, kind: input, shape index: {}]
  %s1 = inlined_call_operand.vmem [shape: f32[5,1,256], index: 1, kind: input, shape index: {}]
  %s2 = inlined_call_operand.vmem [shape: bf16[8,128], index: 2, kind: input, shape index: {}]
  %s3 = inlined_call_operand.vmem [shape: f32[8,2], index: 3, kind: output, shape index: {}]
  %s4 = sld [smem:[#allocation0]]
  $region26: #{_forward.1} parent=0
    _
  %s6 = ssub.s32 1, %s4
  %s7 = scalar_select 0, %s6, %s4
  $region1: #{_forward.1} parent=0
    #allocation2 [shape = 'u8[655360]{0}', space=vmem, size = 0xa0000, scoped, tag = 'input window, operand 0, single buffered']
    #allocation3 [shape = 's32[1]{0}', space=sflag, size = 0x4, scoped, tag = 'scoped memory for _forward.1']
    %8 = vsyncpa [#allocation3], 0
    // Predicated region
    $region2: #{_forward.1} parent=1 // pred_check
      _
    $region3: #{_forward.1} parent=1 // pred_check_branch
      %10 = sbr.rel (0) target = $region5
    $region4: #{_forward.1} parent=1 // pred_region
      %s12 = ssub.s32 20480, 20480
      %13 = vsyncadd [#allocation3], %s12
      %s14 = sshll.u32 [#allocation2], 4
      %s15 = int_to_ptr.vmem [resolvable:$true] %s14
      %20 = dma.hbm_to_vmem [thread:$0]  %s0, 20480, %s15, [#allocation3], 128, 128, 8
    $region5: #{_forward.1} parent=1 // pred_fallthru
      _
    // Predicated region
    $region6: #{_forward.1} parent=1 // pred_check
      _
    $region7: #{_forward.1} parent=1 // pred_check_branch
      %22 = sbr.rel (0) target = $region9
    $region8: #{_forward.1} parent=1 // pred_region
      _
    $region9: #{_forward.1} parent=1 // pred_fallthru
      _
    // Predicated region
    $region10: #{_forward.1} parent=1 // pred_check
      _
    $region11: #{_forward.1} parent=1 // pred_check_branch
      %24 = sbr.rel (0) target = $region13
    $region12: #{_forward.1} parent=1 // pred_region
      _
    $region13: #{_forward.1} parent=1 // pred_fallthru
      _
    // Predicated region
    $region14: #{_forward.1} parent=1 // pred_check
      _
    $region15: #{_forward.1} parent=1 // pred_check_branch
      %26 = sbr.rel (0) target = $region17
    $region16: #{_forward.1} parent=1 // pred_region
      %27 = dma.done [#allocation3], 20480
    $region17: #{_forward.1} parent=1 // pred_fallthru
      _
    %v29 = vld [vmem:[%s2] sm:$0xf]
    %v30 = vld [vmem:[#allocation2] sm:$0xff]
    %v31 = vld [vmem:[#allocation2 + $0x8] sm:$0xff]
    %v32 = vld [vmem:[#allocation2 + $0x10] sm:$0xff]
    %v33 = vld [vmem:[#allocation2 + $0x18] sm:$0xff]
    %v34 = vld [vmem:[#allocation2 + $0x20] sm:$0xff]
    %v35 = vld [vmem:[#allocation2 + $0x28] sm:$0xff]
    %v36 = vld [vmem:[#allocation2 + $0x30] sm:$0xff]
    %v37 = vld [vmem:[#allocation2 + $0x38] sm:$0xff]
    %v38 = vld [vmem:[#allocation2 + $0x40] sm:$0xff]
    %v39 = vld [vmem:[#allocation2 + $0x48] sm:$0xff]
    %v40 = vld [vmem:[#allocation2 + $0x50] sm:$0xff]
    %v41 = vld [vmem:[#allocation2 + $0x58] sm:$0xff]
    %v42 = vld [vmem:[#allocation2 + $0x60] sm:$0xff]
    %v43 = vld [vmem:[#allocation2 + $0x68] sm:$0xff]
    %v44 = vld [vmem:[#allocation2 + $0x70] sm:$0xff]
    %v45 = vld [vmem:[#allocation2 + $0x78] sm:$0xff]
    %v46 = vld [vmem:[%s1] sm:$0x3]
    %v48 = vlaneseq
    %v49 = vshrl.u32 %v48, 7
    %v50 = vsub.s32 0, %v49
    %v51 = vrot.slane %v46, %v50
    %v52 = vlaneseq
    %v53 = vshrl.u32 %v52, 7
    %v54 = vsub.s32 1, %v53
    %v55 = vrot.slane %v46, %v54
    %v74 = vunpack.c.l.b16 %v30
    %v75 = vunpack.c.h.b16 %v30
    %v76 = vunpack.c.l.b16 %v31
    %v77 = vunpack.c.h.b16 %v31
    %v78 = vunpack.c.l.b16 %v32
    %v79 = vunpack.c.h.b16 %v32
    %v80 = vunpack.c.l.b16 %v33
    %v81 = vunpack.c.h.b16 %v33
    %v82 = vunpack.c.l.b16 %v34
    %v83 = vunpack.c.h.b16 %v34
    %v84 = vunpack.c.l.b16 %v35
    %v85 = vunpack.c.h.b16 %v35
    %v86 = vunpack.c.l.b16 %v36
    %v87 = vunpack.c.h.b16 %v36
    %v88 = vunpack.c.l.b16 %v37
    %v89 = vunpack.c.h.b16 %v37
    %v90 = vunpack.c.l.b16 %v38
    %v91 = vunpack.c.h.b16 %v38
    %v92 = vunpack.c.l.b16 %v39
    %v93 = vunpack.c.h.b16 %v39
    %v94 = vunpack.c.l.b16 %v40
    %v95 = vunpack.c.h.b16 %v40
    %v96 = vunpack.c.l.b16 %v41
    %v97 = vunpack.c.h.b16 %v41
    %v98 = vunpack.c.l.b16 %v42
    %v99 = vunpack.c.h.b16 %v42
    %v100 = vunpack.c.l.b16 %v43
    %v101 = vunpack.c.h.b16 %v43
    %v102 = vunpack.c.l.b16 %v44
    %v103 = vunpack.c.h.b16 %v44
    %v104 = vunpack.c.l.b16 %v45
    %v105 = vunpack.c.h.b16 %v45
    %v106 = vpack.c.b16 %v76, %v74
    %v107 = vpack.c.b16 %v77, %v75
    %v108 = vpack.c.b16 %v80, %v78
    %v109 = vpack.c.b16 %v81, %v79
    %v110 = vpack.c.b16 %v84, %v82
    %v111 = vpack.c.b16 %v85, %v83
    %v112 = vpack.c.b16 %v88, %v86
    %v113 = vpack.c.b16 %v89, %v87
    %v114 = vpack.c.b16 %v92, %v90
    %v115 = vpack.c.b16 %v93, %v91
    %v116 = vpack.c.b16 %v96, %v94
    %v117 = vpack.c.b16 %v97, %v95
    %v118 = vpack.c.b16 %v100, %v98
    %v119 = vpack.c.b16 %v101, %v99
    %v120 = vpack.c.b16 %v104, %v102
    %v121 = vpack.c.b16 %v105, %v103
    %138 = vmatprep.subr.bf16.mxu0 %v107
    %139 = vmatpush1.bf16.msra.mxu0 %v106
    %140 = vmatprep.subr.bf16.mxu0 %v109
    %141 = vmatpush1.bf16.msra.mxu0 %v108
    %142 = vmatprep.subr.bf16.mxu0 %v111
    %143 = vmatpush1.bf16.msra.mxu0 %v110
    %144 = vmatprep.subr.bf16.mxu0 %v113
    %145 = vmatpush1.bf16.msra.mxu0 %v112
    %146 = vmatprep.subr.bf16.mxu0 %v115
    %147 = vmatpush1.bf16.msra.mxu0 %v114
    %148 = vmatprep.subr.bf16.mxu0 %v117
    %149 = vmatpush1.bf16.msra.mxu0 %v116
    %150 = vmatprep.subr.bf16.mxu0 %v119
    %151 = vmatpush1.bf16.msra.mxu0 %v118
    %152 = vmatprep.subr.bf16.mxu0 %v121
    %153 = vmatpush1.bf16.msra.mxu0 %v120
    %154 = vmatprep.subr.bf16.mxu0 0
    %155 = vmatpush1.bf16.msra.mxu0 0
    %156 = vmatprep.subr.bf16.mxu0 0
    %157 = vmatpush1.bf16.msra.mxu0 0
    %158 = vmatprep.subr.bf16.mxu0 0
    %159 = vmatpush1.bf16.msra.mxu0 0
    %160 = vmatprep.subr.bf16.mxu0 0
    %161 = vmatpush1.bf16.msra.mxu0 0
    %162 = vmatprep.subr.bf16.mxu0 0
    %163 = vmatpush1.bf16.msra.mxu0 0
    %164 = vmatprep.subr.bf16.mxu0 0
    %165 = vmatpush1.bf16.msra.mxu0 0
    %166 = vmatprep.subr.bf16.mxu0 0
    %167 = vmatpush1.bf16.msra.mxu0 0
    %168 = vmatprep.subr.bf16.mxu0 0
    %169 = vmatpush1.bf16.msra.mxu0 0
    %170 = vmatprep.mubr.bf16.mxu0 0
    %171 = vmatmul.mubr.bf16.gmra.mrb[0].mxu0 %v29
    %v172 = vpop.f32.mrb[0].mxu0
    %v173 = vadd.f32 %v51, %v172
    %v174 = vpop.f32.mrb[0].mxu0
    %v175 = vadd.f32 %v55, %v174
    %v176 = vpop.f32.mrb[0].mxu0
    %v177 = vpop.f32.mrb[0].mxu0
    %178 = vdwg.mxu0
    %v179 = vmax.f32 %v173, 0.0
    %v180 = vmax.f32 %v175, 0.0
    %v181 = vpack.c.bf16 %v179, %v179
    %v182 = vpack.c.bf16 %v180, %v180
    %s183 = scalar_lea.vmem [#allocation2], 256
    %v184 = vld [vmem:[%s183] sm:$0xff]
    %v185 = vld [vmem:[%s183 + $0x8] sm:$0xff]
    %v186 = vld [vmem:[%s183 + $0x10] sm:$0xff]
    %v187 = vld [vmem:[%s183 + $0x18] sm:$0xff]
    %v188 = vld [vmem:[%s183 + $0x20] sm:$0xff]
    %v189 = vld [vmem:[%s183 + $0x28] sm:$0xff]
    %v190 = vld [vmem:[%s183 + $0x30] sm:$0xff]
    %v191 = vld [vmem:[%s183 + $0x38] sm:$0xff]
    %v192 = vld [vmem:[%s183 + $0x40] sm:$0xff]
    %v193 = vld [vmem:[%s183 + $0x48] sm:$0xff]
    %v194 = vld [vmem:[%s183 + $0x50] sm:$0xff]
    %v195 = vld [vmem:[%s183 + $0x58] sm:$0xff]
    %v196 = vld [vmem:[%s183 + $0x60] sm:$0xff]
    %v197 = vld [vmem:[%s183 + $0x68] sm:$0xff]
    %v198 = vld [vmem:[%s183 + $0x70] sm:$0xff]
    %v199 = vld [vmem:[%s183 + $0x78] sm:$0xff]
    %v200 = vld [vmem:[%s183 + $0x80] sm:$0xff]
    %v201 = vld [vmem:[%s183 + $0x88] sm:$0xff]
    %v202 = vld [vmem:[%s183 + $0x90] sm:$0xff]
    %v203 = vld [vmem:[%s183 + $0x98] sm:$0xff]
    %v204 = vld [vmem:[%s183 + $0xa0] sm:$0xff]
    %v205 = vld [vmem:[%s183 + $0xa8] sm:$0xff]
    %v206 = vld [vmem:[%s183 + $0xb0] sm:$0xff]
    %v207 = vld [vmem:[%s183 + $0xb8] sm:$0xff]
    %v208 = vld [vmem:[%s183 + $0xc0] sm:$0xff]
    %v209 = vld [vmem:[%s183 + $0xc8] sm:$0xff]
    %v210 = vld [vmem:[%s183 + $0xd0] sm:$0xff]
    %v211 = vld [vmem:[%s183 + $0xd8] sm:$0xff]
    %v212 = vld [vmem:[%s183 + $0xe0] sm:$0xff]
    %v213 = vld [vmem:[%s183 + $0xe8] sm:$0xff]
    %v214 = vld [vmem:[%s183 + $0xf0] sm:$0xff]
    %v215 = vld [vmem:[%s183 + $0xf8] sm:$0xff]
    %s216 = scalar_lea.vmem %s1, 2
    %v217 = vld [vmem:[%s216] sm:$0x3]
    %v219 = vlaneseq
    %v220 = vshrl.u32 %v219, 7
    %v221 = vsub.s32 0, %v220
    %v222 = vrot.slane %v217, %v221
    %v223 = vlaneseq
    %v224 = vshrl.u32 %v223, 7
    %v225 = vsub.s32 1, %v224
    %v226 = vrot.slane %v217, %v225
    %v261 = vunpack.c.l.b16 %v184
    %v262 = vunpack.c.h.b16 %v184
    %v263 = vunpack.c.l.b16 %v185
    %v264 = vunpack.c.h.b16 %v185
    %v265 = vunpack.c.l.b16 %v186
    %v266 = vunpack.c.h.b16 %v186
    %v267 = vunpack.c.l.b16 %v187
    %v268 = vunpack.c.h.b16 %v187
    %v269 = vunpack.c.l.b16 %v188
    %v270 = vunpack.c.h.b16 %v188
    %v271 = vunpack.c.l.b16 %v189
    %v272 = vunpack.c.h.b16 %v189
    %v273 = vunpack.c.l.b16 %v190
    %v274 = vunpack.c.h.b16 %v190
    %v275 = vunpack.c.l.b16 %v191
    %v276 = vunpack.c.h.b16 %v191
    %v277 = vunpack.c.l.b16 %v192
    %v278 = vunpack.c.h.b16 %v192
    %v279 = vunpack.c.l.b16 %v193
    %v280 = vunpack.c.h.b16 %v193
    %v281 = vunpack.c.l.b16 %v194
    %v282 = vunpack.c.h.b16 %v194
    %v283 = vunpack.c.l.b16 %v195
    %v284 = vunpack.c.h.b16 %v195
    %v285 = vunpack.c.l.b16 %v196
    %v286 = vunpack.c.h.b16 %v196
    %v287 = vunpack.c.l.b16 %v197
    %v288 = vunpack.c.h.b16 %v197
    %v289 = vunpack.c.l.b16 %v198
    %v290 = vunpack.c.h.b16 %v198
    %v291 = vunpack.c.l.b16 %v199
    %v292 = vunpack.c.h.b16 %v199
    %v293 = vunpack.c.l.b16 %v200
    %v294 = vunpack.c.h.b16 %v200
    %v295 = vunpack.c.l.b16 %v201
    %v296 = vunpack.c.h.b16 %v201
    %v297 = vunpack.c.l.b16 %v202
    %v298 = vunpack.c.h.b16 %v202
    %v299 = vunpack.c.l.b16 %v203
    %v300 = vunpack.c.h.b16 %v203
    %v301 = vunpack.c.l.b16 %v204
    %v302 = vunpack.c.h.b16 %v204
    %v303 = vunpack.c.l.b16 %v205
    %v304 = vunpack.c.h.b16 %v205
    %v305 = vunpack.c.l.b16 %v206
    %v306 = vunpack.c.h.b16 %v206
    %v307 = vunpack.c.l.b16 %v207
    %v308 = vunpack.c.h.b16 %v207
    %v309 = vunpack.c.l.b16 %v208
    %v310 = vunpack.c.h.b16 %v208
    %v311 = vunpack.c.l.b16 %v209
    %v312 = vunpack.c.h.b16 %v209
    %v313 = vunpack.c.l.b16 %v210
    %v314 = vunpack.c.h.b16 %v210
    %v315 = vunpack.c.l.b16 %v211
    %v316 = vunpack.c.h.b16 %v211
    %v317 = vunpack.c.l.b16 %v212
    %v318 = vunpack.c.h.b16 %v212
    %v319 = vunpack.c.l.b16 %v213
    %v320 = vunpack.c.h.b16 %v213
    %v321 = vunpack.c.l.b16 %v214
    %v322 = vunpack.c.h.b16 %v214
    %v323 = vunpack.c.l.b16 %v215
    %v324 = vunpack.c.h.b16 %v215
    %v325 = vpack.c.b16 %v263, %v261
    %v326 = vpack.c.b16 %v264, %v262
    %v327 = vpack.c.b16 %v267, %v265
    %v328 = vpack.c.b16 %v268, %v266
    %v329 = vpack.c.b16 %v271, %v269
    %v330 = vpack.c.b16 %v272, %v270
    %v331 = vpack.c.b16 %v275, %v273
    %v332 = vpack.c.b16 %v276, %v274
    %v333 = vpack.c.b16 %v279, %v277
    %v334 = vpack.c.b16 %v280, %v278
    %v335 = vpack.c.b16 %v283, %v281
    %v336 = vpack.c.b16 %v284, %v282
    %v337 = vpack.c.b16 %v287, %v285
    %v338 = vpack.c.b16 %v288, %v286
    %v339 = vpack.c.b16 %v291, %v289
    %v340 = vpack.c.b16 %v292, %v290
    %v341 = vpack.c.b16 %v295, %v293
    %v342 = vpack.c.b16 %v296, %v294
    %v343 = vpack.c.b16 %v299, %v297
    %v344 = vpack.c.b16 %v300, %v298
    %v345 = vpack.c.b16 %v303, %v301
    %v346 = vpack.c.b16 %v304, %v302
    %v347 = vpack.c.b16 %v307, %v305
    %v348 = vpack.c.b16 %v308, %v306
    %v349 = vpack.c.b16 %v311, %v309
    %v350 = vpack.c.b16 %v312, %v310
    %v351 = vpack.c.b16 %v315, %v313
    %v352 = vpack.c.b16 %v316, %v314
    %v353 = vpack.c.b16 %v319, %v317
    %v354 = vpack.c.b16 %v320, %v318
    %v355 = vpack.c.b16 %v323, %v321
    %v356 = vpack.c.b16 %v324, %v322
    %389 = vmatprep.subr.bf16.mxu0 %v326
    %390 = vmatpush1.bf16.msra.mxu0 %v325
    %391 = vmatprep.subr.bf16.mxu0 %v328
    %392 = vmatpush1.bf16.msra.mxu0 %v327
    %393 = vmatprep.subr.bf16.mxu0 %v330
    %394 = vmatpush1.bf16.msra.mxu0 %v329
    %395 = vmatprep.subr.bf16.mxu0 %v332
    %396 = vmatpush1.bf16.msra.mxu0 %v331
    %397 = vmatprep.subr.bf16.mxu0 %v334
    %398 = vmatpush1.bf16.msra.mxu0 %v333
    %399 = vmatprep.subr.bf16.mxu0 %v336
    %400 = vmatpush1.bf16.msra.mxu0 %v335
    %401 = vmatprep.subr.bf16.mxu0 %v338
    %402 = vmatpush1.bf16.msra.mxu0 %v337
    %403 = vmatprep.subr.bf16.mxu0 %v340
    %404 = vmatpush1.bf16.msra.mxu0 %v339
    %405 = vmatprep.subr.bf16.mxu0 %v342
    %406 = vmatpush1.bf16.msra.mxu0 %v341
    %407 = vmatprep.subr.bf16.mxu0 %v344
    %408 = vmatpush1.bf16.msra.mxu0 %v343
    %409 = vmatprep.subr.bf16.mxu0 %v346
    %410 = vmatpush1.bf16.msra.mxu0 %v345
    %411 = vmatprep.subr.bf16.mxu0 %v348
    %412 = vmatpush1.bf16.msra.mxu0 %v347
    %413 = vmatprep.subr.bf16.mxu0 %v350
    %414 = vmatpush1.bf16.msra.mxu0 %v349
    %415 = vmatprep.subr.bf16.mxu0 %v352
    %416 = vmatpush1.bf16.msra.mxu0 %v351
    %417 = vmatprep.subr.bf16.mxu0 %v354
    %418 = vmatpush1.bf16.msra.mxu0 %v353
    %419 = vmatprep.subr.bf16.mxu0 %v356
    %420 = vmatpush1.bf16.msra.mxu0 %v355
    %421 = vmatprep.mubr.bf16.mxu0 %v182
    %422 = vmatmul.mubr.bf16.gmra.mrb[0].mxu0 %v181
    %v423 = vpop.f32.mrb[0].mxu0
    %v424 = vadd.f32 %v222, %v423
    %v425 = vpop.f32.mrb[0].mxu0
    %v426 = vadd.f32 %v226, %v425
    %v427 = vpop.f32.mrb[0].mxu0
    %v428 = vpop.f32.mrb[0].mxu0
    %429 = vdwg.mxu0
    %v430 = vpack.c.bf16 %v424, %v424
    %v431 = vpack.c.bf16 %v426, %v426
    %s432 = scalar_lea.vmem [#allocation2], 512
    %v433 = vld [vmem:[%s432] sm:$0xff]
    %v434 = vld [vmem:[%s432 + $0x8] sm:$0xff]
    %v435 = vld [vmem:[%s432 + $0x10] sm:$0xff]
    %v436 = vld [vmem:[%s432 + $0x18] sm:$0xff]
    %v437 = vld [vmem:[%s432 + $0x20] sm:$0xff]
    %v438 = vld [vmem:[%s432 + $0x28] sm:$0xff]
    %v439 = vld [vmem:[%s432 + $0x30] sm:$0xff]
    %v440 = vld [vmem:[%s432 + $0x38] sm:$0xff]
    %v441 = vld [vmem:[%s432 + $0x40] sm:$0xff]
    %v442 = vld [vmem:[%s432 + $0x48] sm:$0xff]
    %v443 = vld [vmem:[%s432 + $0x50] sm:$0xff]
    %v444 = vld [vmem:[%s432 + $0x58] sm:$0xff]
    %v445 = vld [vmem:[%s432 + $0x60] sm:$0xff]
    %v446 = vld [vmem:[%s432 + $0x68] sm:$0xff]
    %v447 = vld [vmem:[%s432 + $0x70] sm:$0xff]
    %v448 = vld [vmem:[%s432 + $0x78] sm:$0xff]
    %v449 = vld [vmem:[%s432 + $0x80] sm:$0xff]
    %v450 = vld [vmem:[%s432 + $0x88] sm:$0xff]
    %v451 = vld [vmem:[%s432 + $0x90] sm:$0xff]
    %v452 = vld [vmem:[%s432 + $0x98] sm:$0xff]
    %v453 = vld [vmem:[%s432 + $0xa0] sm:$0xff]
    %v454 = vld [vmem:[%s432 + $0xa8] sm:$0xff]
    %v455 = vld [vmem:[%s432 + $0xb0] sm:$0xff]
    %v456 = vld [vmem:[%s432 + $0xb8] sm:$0xff]
    %v457 = vld [vmem:[%s432 + $0xc0] sm:$0xff]
    %v458 = vld [vmem:[%s432 + $0xc8] sm:$0xff]
    %v459 = vld [vmem:[%s432 + $0xd0] sm:$0xff]
    %v460 = vld [vmem:[%s432 + $0xd8] sm:$0xff]
    %v461 = vld [vmem:[%s432 + $0xe0] sm:$0xff]
    %v462 = vld [vmem:[%s432 + $0xe8] sm:$0xff]
    %v463 = vld [vmem:[%s432 + $0xf0] sm:$0xff]
    %v464 = vld [vmem:[%s432 + $0xf8] sm:$0xff]
    %s465 = scalar_lea.vmem %s1, 4
    %v466 = vld [vmem:[%s465] sm:$0x3]
    %v468 = vlaneseq
    %v469 = vshrl.u32 %v468, 7
    %v470 = vsub.s32 0, %v469
    %v471 = vrot.slane %v466, %v470
    %v472 = vlaneseq
    %v473 = vshrl.u32 %v472, 7
    %v474 = vsub.s32 1, %v473
    %v475 = vrot.slane %v466, %v474
    %v510 = vunpack.c.l.b16 %v433
    %v511 = vunpack.c.h.b16 %v433
    %v512 = vunpack.c.l.b16 %v434
    %v513 = vunpack.c.h.b16 %v434
    %v514 = vunpack.c.l.b16 %v435
    %v515 = vunpack.c.h.b16 %v435
    %v516 = vunpack.c.l.b16 %v436
    %v517 = vunpack.c.h.b16 %v436
    %v518 = vunpack.c.l.b16 %v437
    %v519 = vunpack.c.h.b16 %v437
    %v520 = vunpack.c.l.b16 %v438
    %v521 = vunpack.c.h.b16 %v438
    %v522 = vunpack.c.l.b16 %v439
    %v523 = vunpack.c.h.b16 %v439
    %v524 = vunpack.c.l.b16 %v440
    %v525 = vunpack.c.h.b16 %v440
    %v526 = vunpack.c.l.b16 %v441
    %v527 = vunpack.c.h.b16 %v441
    %v528 = vunpack.c.l.b16 %v442
    %v529 = vunpack.c.h.b16 %v442
    %v530 = vunpack.c.l.b16 %v443
    %v531 = vunpack.c.h.b16 %v443
    %v532 = vunpack.c.l.b16 %v444
    %v533 = vunpack.c.h.b16 %v444
    %v534 = vunpack.c.l.b16 %v445
    %v535 = vunpack.c.h.b16 %v445
    %v536 = vunpack.c.l.b16 %v446
    %v537 = vunpack.c.h.b16 %v446
    %v538 = vunpack.c.l.b16 %v447
    %v539 = vunpack.c.h.b16 %v447
    %v540 = vunpack.c.l.b16 %v448
    %v541 = vunpack.c.h.b16 %v448
    %v542 = vunpack.c.l.b16 %v449
    %v543 = vunpack.c.h.b16 %v449
    %v544 = vunpack.c.l.b16 %v450
    %v545 = vunpack.c.h.b16 %v450
    %v546 = vunpack.c.l.b16 %v451
    %v547 = vunpack.c.h.b16 %v451
    %v548 = vunpack.c.l.b16 %v452
    %v549 = vunpack.c.h.b16 %v452
    %v550 = vunpack.c.l.b16 %v453
    %v551 = vunpack.c.h.b16 %v453
    %v552 = vunpack.c.l.b16 %v454
    %v553 = vunpack.c.h.b16 %v454
    %v554 = vunpack.c.l.b16 %v455
    %v555 = vunpack.c.h.b16 %v455
    %v556 = vunpack.c.l.b16 %v456
    %v557 = vunpack.c.h.b16 %v456
    %v558 = vunpack.c.l.b16 %v457
    %v559 = vunpack.c.h.b16 %v457
    %v560 = vunpack.c.l.b16 %v458
    %v561 = vunpack.c.h.b16 %v458
    %v562 = vunpack.c.l.b16 %v459
    %v563 = vunpack.c.h.b16 %v459
    %v564 = vunpack.c.l.b16 %v460
    %v565 = vunpack.c.h.b16 %v460
    %v566 = vunpack.c.l.b16 %v461
    %v567 = vunpack.c.h.b16 %v461
    %v568 = vunpack.c.l.b16 %v462
    %v569 = vunpack.c.h.b16 %v462
    %v570 = vunpack.c.l.b16 %v463
    %v571 = vunpack.c.h.b16 %v463
    %v572 = vunpack.c.l.b16 %v464
    %v573 = vunpack.c.h.b16 %v464
    %v574 = vpack.c.b16 %v512, %v510
    %v575 = vpack.c.b16 %v513, %v511
    %v576 = vpack.c.b16 %v516, %v514
    %v577 = vpack.c.b16 %v517, %v515
    %v578 = vpack.c.b16 %v520, %v518
    %v579 = vpack.c.b16 %v521, %v519
    %v580 = vpack.c.b16 %v524, %v522
    %v581 = vpack.c.b16 %v525, %v523
    %v582 = vpack.c.b16 %v528, %v526
    %v583 = vpack.c.b16 %v529, %v527
    %v584 = vpack.c.b16 %v532, %v530
    %v585 = vpack.c.b16 %v533, %v531
    %v586 = vpack.c.b16 %v536, %v534
    %v587 = vpack.c.b16 %v537, %v535
    %v588 = vpack.c.b16 %v540, %v538
    %v589 = vpack.c.b16 %v541, %v539
    %v590 = vpack.c.b16 %v544, %v542
    %v591 = vpack.c.b16 %v545, %v543
    %v592 = vpack.c.b16 %v548, %v546
    %v593 = vpack.c.b16 %v549, %v547
    %v594 = vpack.c.b16 %v552, %v550
    %v595 = vpack.c.b16 %v553, %v551
    %v596 = vpack.c.b16 %v556, %v554
    %v597 = vpack.c.b16 %v557, %v555
    %v598 = vpack.c.b16 %v560, %v558
    %v599 = vpack.c.b16 %v561, %v559
    %v600 = vpack.c.b16 %v564, %v562
    %v601 = vpack.c.b16 %v565, %v563
    %v602 = vpack.c.b16 %v568, %v566
    %v603 = vpack.c.b16 %v569, %v567
    %v604 = vpack.c.b16 %v572, %v570
    %v605 = vpack.c.b16 %v573, %v571
    %638 = vmatprep.subr.bf16.mxu0 %v575
    %639 = vmatpush1.bf16.msra.mxu0 %v574
    %640 = vmatprep.subr.bf16.mxu0 %v577
    %641 = vmatpush1.bf16.msra.mxu0 %v576
    %642 = vmatprep.subr.bf16.mxu0 %v579
    %643 = vmatpush1.bf16.msra.mxu0 %v578
    %644 = vmatprep.subr.bf16.mxu0 %v581
    %645 = vmatpush1.bf16.msra.mxu0 %v580
    %646 = vmatprep.subr.bf16.mxu0 %v583
    %647 = vmatpush1.bf16.msra.mxu0 %v582
    %648 = vmatprep.subr.bf16.mxu0 %v585
    %649 = vmatpush1.bf16.msra.mxu0 %v584
    %650 = vmatprep.subr.bf16.mxu0 %v587
    %651 = vmatpush1.bf16.msra.mxu0 %v586
    %652 = vmatprep.subr.bf16.mxu0 %v589
    %653 = vmatpush1.bf16.msra.mxu0 %v588
    %654 = vmatprep.subr.bf16.mxu0 %v591
    %655 = vmatpush1.bf16.msra.mxu0 %v590
    %656 = vmatprep.subr.bf16.mxu0 %v593
    %657 = vmatpush1.bf16.msra.mxu0 %v592
    %658 = vmatprep.subr.bf16.mxu0 %v595
    %659 = vmatpush1.bf16.msra.mxu0 %v594
    %660 = vmatprep.subr.bf16.mxu0 %v597
    %661 = vmatpush1.bf16.msra.mxu0 %v596
    %662 = vmatprep.subr.bf16.mxu0 %v599
    %663 = vmatpush1.bf16.msra.mxu0 %v598
    %664 = vmatprep.subr.bf16.mxu0 %v601
    %665 = vmatpush1.bf16.msra.mxu0 %v600
    %666 = vmatprep.subr.bf16.mxu0 %v603
    %667 = vmatpush1.bf16.msra.mxu0 %v602
    %668 = vmatprep.subr.bf16.mxu0 %v605
    %669 = vmatpush1.bf16.msra.mxu0 %v604
    %670 = vmatprep.mubr.bf16.mxu0 %v431
    %671 = vmatmul.mubr.bf16.gmra.mrb[0].mxu0 %v430
    %v672 = vpop.f32.mrb[0].mxu0
    %v673 = vadd.f32 %v471, %v672
    %v674 = vpop.f32.mrb[0].mxu0
    %v675 = vadd.f32 %v475, %v674
    %v676 = vpop.f32.mrb[0].mxu0
    %v677 = vpop.f32.mrb[0].mxu0
    %678 = vdwg.mxu0
    %v679 = vmax.f32 %v673, 0.0
    %v680 = vmax.f32 %v675, 0.0
    %v681 = vadd.f32 %v679, %v424
    %v682 = vadd.f32 %v680, %v426
    %v683 = vpack.c.bf16 %v681, %v681
    %v684 = vpack.c.bf16 %v682, %v682
    %s685 = scalar_lea.vmem [#allocation2], 768
    %v686 = vld [vmem:[%s685] sm:$0xf]
    %v687 = vld [vmem:[%s685 + $0x8] sm:$0xf]
    %v688 = vld [vmem:[%s685 + $0x10] sm:$0xf]
    %v689 = vld [vmem:[%s685 + $0x18] sm:$0xf]
    %v690 = vld [vmem:[%s685 + $0x20] sm:$0xf]
    %v691 = vld [vmem:[%s685 + $0x28] sm:$0xf]
    %v692 = vld [vmem:[%s685 + $0x30] sm:$0xf]
    %v693 = vld [vmem:[%s685 + $0x38] sm:$0xf]
    %v694 = vld [vmem:[%s685 + $0x40] sm:$0xf]
    %v695 = vld [vmem:[%s685 + $0x48] sm:$0xf]
    %v696 = vld [vmem:[%s685 + $0x50] sm:$0xf]
    %v697 = vld [vmem:[%s685 + $0x58] sm:$0xf]
    %v698 = vld [vmem:[%s685 + $0x60] sm:$0xf]
    %v699 = vld [vmem:[%s685 + $0x68] sm:$0xf]
    %v700 = vld [vmem:[%s685 + $0x70] sm:$0xf]
    %v701 = vld [vmem:[%s685 + $0x78] sm:$0xf]
    %v702 = vld [vmem:[%s685 + $0x80] sm:$0xf]
    %v703 = vld [vmem:[%s685 + $0x88] sm:$0xf]
    %v704 = vld [vmem:[%s685 + $0x90] sm:$0xf]
    %v705 = vld [vmem:[%s685 + $0x98] sm:$0xf]
    %v706 = vld [vmem:[%s685 + $0xa0] sm:$0xf]
    %v707 = vld [vmem:[%s685 + $0xa8] sm:$0xf]
    %v708 = vld [vmem:[%s685 + $0xb0] sm:$0xf]
    %v709 = vld [vmem:[%s685 + $0xb8] sm:$0xf]
    %v710 = vld [vmem:[%s685 + $0xc0] sm:$0xf]
    %v711 = vld [vmem:[%s685 + $0xc8] sm:$0xf]
    %v712 = vld [vmem:[%s685 + $0xd0] sm:$0xf]
    %v713 = vld [vmem:[%s685 + $0xd8] sm:$0xf]
    %v714 = vld [vmem:[%s685 + $0xe0] sm:$0xf]
    %v715 = vld [vmem:[%s685 + $0xe8] sm:$0xf]
    %v716 = vld [vmem:[%s685 + $0xf0] sm:$0xf]
    %v717 = vld [vmem:[%s685 + $0xf8] sm:$0xf]
    %s718 = scalar_lea.vmem %s1, 6
    %v719 = vld [vmem:[%s718] sm:$0x1]
    %v721 = vlaneseq
    %v722 = vshrl.u32 %v721, 7
    %v723 = vsub.s32 0, %v722
    %v724 = vrot.slane %v719, %v723
    %v758 = vunpack.c.l.b16 %v686
    %v759 = vunpack.c.l.b16 %v687
    %v760 = vunpack.c.l.b16 %v688
    %v761 = vunpack.c.l.b16 %v689
    %v762 = vunpack.c.l.b16 %v690
    %v763 = vunpack.c.l.b16 %v691
    %v764 = vunpack.c.l.b16 %v692
    %v765 = vunpack.c.l.b16 %v693
    %v766 = vunpack.c.l.b16 %v694
    %v767 = vunpack.c.l.b16 %v695
    %v768 = vunpack.c.l.b16 %v696
    %v769 = vunpack.c.l.b16 %v697
    %v770 = vunpack.c.l.b16 %v698
    %v771 = vunpack.c.l.b16 %v699
    %v772 = vunpack.c.l.b16 %v700
    %v773 = vunpack.c.l.b16 %v701
    %v774 = vunpack.c.l.b16 %v702
    %v775 = vunpack.c.l.b16 %v703
    %v776 = vunpack.c.l.b16 %v704
    %v777 = vunpack.c.l.b16 %v705
    %v778 = vunpack.c.l.b16 %v706
    %v779 = vunpack.c.l.b16 %v707
    %v780 = vunpack.c.l.b16 %v708
    %v781 = vunpack.c.l.b16 %v709
    %v782 = vunpack.c.l.b16 %v710
    %v783 = vunpack.c.l.b16 %v711
    %v784 = vunpack.c.l.b16 %v712
    %v785 = vunpack.c.l.b16 %v713
    %v786 = vunpack.c.l.b16 %v714
    %v787 = vunpack.c.l.b16 %v715
    %v788 = vunpack.c.l.b16 %v716
    %v789 = vunpack.c.l.b16 %v717
    %v790 = vpack.c.b16 %v759, %v758
    %v791 = vpack.c.b16 %v761, %v760
    %v792 = vpack.c.b16 %v763, %v762
    %v793 = vpack.c.b16 %v765, %v764
    %v794 = vpack.c.b16 %v767, %v766
    %v795 = vpack.c.b16 %v769, %v768
    %v796 = vpack.c.b16 %v771, %v770
    %v797 = vpack.c.b16 %v773, %v772
    %v798 = vpack.c.b16 %v775, %v774
    %v799 = vpack.c.b16 %v777, %v776
    %v800 = vpack.c.b16 %v779, %v778
    %v801 = vpack.c.b16 %v781, %v780
    %v802 = vpack.c.b16 %v783, %v782
    %v803 = vpack.c.b16 %v785, %v784
    %v804 = vpack.c.b16 %v787, %v786
    %v805 = vpack.c.b16 %v789, %v788
    %822 = vmatprep.subr.bf16.mxu0 0
    %823 = vmatpush1.bf16.msra.mxu0 %v790
    %824 = vmatprep.subr.bf16.mxu0 0
    %825 = vmatpush1.bf16.msra.mxu0 %v791
    %826 = vmatprep.subr.bf16.mxu0 0
    %827 = vmatpush1.bf16.msra.mxu0 %v792
    %828 = vmatprep.subr.bf16.mxu0 0
    %829 = vmatpush1.bf16.msra.mxu0 %v793
    %830 = vmatprep.subr.bf16.mxu0 0
    %831 = vmatpush1.bf16.msra.mxu0 %v794
    %832 = vmatprep.subr.bf16.mxu0 0
    %833 = vmatpush1.bf16.msra.mxu0 %v795
    %834 = vmatprep.subr.bf16.mxu0 0
    %835 = vmatpush1.bf16.msra.mxu0 %v796
    %836 = vmatprep.subr.bf16.mxu0 0
    %837 = vmatpush1.bf16.msra.mxu0 %v797
    %838 = vmatprep.subr.bf16.mxu0 0
    %839 = vmatpush1.bf16.msra.mxu0 %v798
    %840 = vmatprep.subr.bf16.mxu0 0
    %841 = vmatpush1.bf16.msra.mxu0 %v799
    %842 = vmatprep.subr.bf16.mxu0 0
    %843 = vmatpush1.bf16.msra.mxu0 %v800
    %844 = vmatprep.subr.bf16.mxu0 0
    %845 = vmatpush1.bf16.msra.mxu0 %v801
    %846 = vmatprep.subr.bf16.mxu0 0
    %847 = vmatpush1.bf16.msra.mxu0 %v802
    %848 = vmatprep.subr.bf16.mxu0 0
    %849 = vmatpush1.bf16.msra.mxu0 %v803
    %850 = vmatprep.subr.bf16.mxu0 0
    %851 = vmatpush1.bf16.msra.mxu0 %v804
    %852 = vmatprep.subr.bf16.mxu0 0
    %853 = vmatpush1.bf16.msra.mxu0 %v805
    %854 = vmatprep.mubr.bf16.mxu0 %v684
    %855 = vmatmul.mubr.bf16.gmra.mrb[0].mxu0 %v683
    %v856 = vpop.f32.mrb[0].mxu0
    %v857 = vadd.f32 %v724, %v856
    %v858 = vpop.f32.mrb[0].mxu0
    %v859 = vpop.f32.mrb[0].mxu0
    %v860 = vpop.f32.mrb[0].mxu0
    %861 = vdwg.mxu0
    %v862 = vmax.f32 %v857, 0.0
    %v863 = vpack.c.bf16 %v862, %v862
    %s864 = scalar_lea.vmem [#allocation2], 1024
    %v865 = vld [vmem:[%s864] sm:$0xf]
    %v866 = vld [vmem:[%s864 + $0x8] sm:$0xf]
    %v867 = vld [vmem:[%s864 + $0x10] sm:$0xf]
    %v868 = vld [vmem:[%s864 + $0x18] sm:$0xf]
    %v869 = vld [vmem:[%s864 + $0x20] sm:$0xf]
    %v870 = vld [vmem:[%s864 + $0x28] sm:$0xf]
    %v871 = vld [vmem:[%s864 + $0x30] sm:$0xf]
    %v872 = vld [vmem:[%s864 + $0x38] sm:$0xf]
    %v873 = vld [vmem:[%s864 + $0x40] sm:$0xf]
    %v874 = vld [vmem:[%s864 + $0x48] sm:$0xf]
    %v875 = vld [vmem:[%s864 + $0x50] sm:$0xf]
    %v876 = vld [vmem:[%s864 + $0x58] sm:$0xf]
    %v877 = vld [vmem:[%s864 + $0x60] sm:$0xf]
    %v878 = vld [vmem:[%s864 + $0x68] sm:$0xf]
    %v879 = vld [vmem:[%s864 + $0x70] sm:$0xf]
    %v880 = vld [vmem:[%s864 + $0x78] sm:$0xf]
    %s881 = scalar_lea.vmem %s1, 8
    %v882 = vld [vmem:[%s881] sm:$0x1]
    %v884 = vlaneseq
    %v885 = vshrl.u32 %v884, 7
    %v886 = vsub.s32 0, %v885
    %v887 = vrot.slane %v882, %v886
    %v905 = vunpack.c.l.b16 %v865
    %v906 = vunpack.c.l.b16 %v866
    %v907 = vunpack.c.l.b16 %v867
    %v908 = vunpack.c.l.b16 %v868
    %v909 = vunpack.c.l.b16 %v869
    %v910 = vunpack.c.l.b16 %v870
    %v911 = vunpack.c.l.b16 %v871
    %v912 = vunpack.c.l.b16 %v872
    %v913 = vunpack.c.l.b16 %v873
    %v914 = vunpack.c.l.b16 %v874
    %v915 = vunpack.c.l.b16 %v875
    %v916 = vunpack.c.l.b16 %v876
    %v917 = vunpack.c.l.b16 %v877
    %v918 = vunpack.c.l.b16 %v878
    %v919 = vunpack.c.l.b16 %v879
    %v920 = vunpack.c.l.b16 %v880
    %v921 = vpack.c.b16 %v906, %v905
    %v922 = vpack.c.b16 %v908, %v907
    %v923 = vpack.c.b16 %v910, %v909
    %v924 = vpack.c.b16 %v912, %v911
    %v925 = vpack.c.b16 %v914, %v913
    %v926 = vpack.c.b16 %v916, %v915
    %v927 = vpack.c.b16 %v918, %v917
    %v928 = vpack.c.b16 %v920, %v919
    %937 = vmatprep.subr.bf16.mxu0 0
    %938 = vmatpush1.bf16.msra.mxu0 %v921
    %939 = vmatprep.subr.bf16.mxu0 0
    %940 = vmatpush1.bf16.msra.mxu0 %v922
    %941 = vmatprep.subr.bf16.mxu0 0
    %942 = vmatpush1.bf16.msra.mxu0 %v923
    %943 = vmatprep.subr.bf16.mxu0 0
    %944 = vmatpush1.bf16.msra.mxu0 %v924
    %945 = vmatprep.subr.bf16.mxu0 0
    %946 = vmatpush1.bf16.msra.mxu0 %v925
    %947 = vmatprep.subr.bf16.mxu0 0
    %948 = vmatpush1.bf16.msra.mxu0 %v926
    %949 = vmatprep.subr.bf16.mxu0 0
    %950 = vmatpush1.bf16.msra.mxu0 %v927
    %951 = vmatprep.subr.bf16.mxu0 0
    %952 = vmatpush1.bf16.msra.mxu0 %v928
    %953 = vmatprep.subr.bf16.mxu0 0
    %954 = vmatpush1.bf16.msra.mxu0 0
    %955 = vmatprep.subr.bf16.mxu0 0
    %956 = vmatpush1.bf16.msra.mxu0 0
    %957 = vmatprep.subr.bf16.mxu0 0
    %958 = vmatpush1.bf16.msra.mxu0 0
    %959 = vmatprep.subr.bf16.mxu0 0
    %960 = vmatpush1.bf16.msra.mxu0 0
    %961 = vmatprep.subr.bf16.mxu0 0
    %962 = vmatpush1.bf16.msra.mxu0 0
    %963 = vmatprep.subr.bf16.mxu0 0
    %964 = vmatpush1.bf16.msra.mxu0 0
    %965 = vmatprep.subr.bf16.mxu0 0
    %966 = vmatpush1.bf16.msra.mxu0 0
    %967 = vmatprep.subr.bf16.mxu0 0
    %968 = vmatpush1.bf16.msra.mxu0 0
    %969 = vmatprep.mubr.bf16.mxu0 0
    %970 = vmatmul.mubr.bf16.gmra.mrb[0].mxu0 %v863
    %v971 = vpop.f32.mrb[0].mxu0
    %v972 = vadd.f32 %v887, %v971
    %v973 = vpop.f32.mrb[0].mxu0
    %v974 = vpop.f32.mrb[0].mxu0
    %v975 = vpop.f32.mrb[0].mxu0
    %976 = vdwg.mxu0
    %vm977 = vcmask 15360
    %978 = vst.msk [vmem:[%s3] sm:$0xff] %vm977, %v972
    // Predicated region
    $region18: #{_forward.1} parent=1 // pred_check
      _
    $region19: #{_forward.1} parent=1 // pred_check_branch
      %980 = sbr.rel (0) target = $region21
    $region20: #{_forward.1} parent=1 // pred_region
      _
    $region21: #{_forward.1} parent=1 // pred_fallthru
      _
    // Predicated region
    $region22: #{_forward.1} parent=1 // pred_check
      _
    $region23: #{_forward.1} parent=1 // pred_check_branch
      %982 = sbr.rel (0) target = $region25
    $region24: #{_forward.1} parent=1 // pred_region
      _
    $region25: #{_forward.1} parent=1 // pred_fallthru
      _
    %983 = vsyncpa [#allocation3], 1

</llo_original>
